<compile_context>
chip_gen: v6e
topology: v6e:2x2x1
jax: 0.10.0
libtpu: 0.0.40
codegen_flags: <defaults>
</compile_context>

<pallas_src>
import functools

import jax
import jax.numpy as jnp
from jax.experimental import pallas as pl
from jax.experimental.pallas import tpu as pltpu


def value_net_kernel(s_ref, a_ref, w1s_ref, w1a_ref, b1_ref,
                     w2_ref, b2_ref, w3_ref, b3_ref, out_ref):
    mm = w2_ref.dtype                 # matmul input dtype (f32 or bf16)
    a_dim = a_ref.shape[-1]

    # ---- layer 1: concat folded as split contributions, + b1, ReLU ----
    h1 = jnp.dot(s_ref[...].astype(mm), w1s_ref[...],
                 preferred_element_type=jnp.float32)
    if a_dim == 1:
        # A == 1: outer product via VPU broadcast (exact, avoids a K=1 matmul).
        h1 = h1 + a_ref[...].astype(jnp.float32) * w1a_ref[...].astype(jnp.float32)
    else:
        h1 = h1 + jnp.dot(a_ref[...].astype(mm), w1a_ref[...],
                          preferred_element_type=jnp.float32)
    h1 = jnp.maximum(h1 + b1_ref[...], 0.0)

    # ---- layer 2: h1 @ W2 + b2, ReLU (f32 accumulation) ----
    h2 = jnp.dot(h1.astype(mm), w2_ref[...],
                 preferred_element_type=jnp.float32)
    h2 = jnp.maximum(h2 + b2_ref[...], 0.0)

    # ---- output layer: contract H of both operands -> lane-dense (1, tile_b) ----
    q = jax.lax.dot_general(w3_ref[...], h2.astype(mm),
                            dimension_numbers=(((1,), (1,)), ((), ())),
                            preferred_element_type=jnp.float32)
    out_ref[...] = (q + b3_ref[0]).astype(out_ref.dtype)


def prepare_params(params, state_dim, *, use_bf16=True):
    """One-time (hoisted) weight prep: split W1, dtype cast, bias reshapes."""
    w1, b1, w2, b2, w3, b3 = params
    mm = jnp.bfloat16 if use_bf16 else jnp.float32
    w1_s = jnp.asarray(w1[:state_dim], mm)            # (S, H)
    w1_a = jnp.asarray(w1[state_dim:], mm)            # (A, H)
    b1r = jnp.asarray(b1, jnp.float32).reshape(1, -1)  # (1, H)
    w2c = jnp.asarray(w2, mm)                          # (H, H)
    b2r = jnp.asarray(b2, jnp.float32).reshape(1, -1)  # (1, H)
    w3r = jnp.asarray(w3, mm).reshape(1, -1)           # (1, H)
    b3s = jnp.asarray(b3, jnp.float32).reshape(1)      # (1,)  -> SMEM scalar
    return (w1_s, w1_a, b1r, w2c, b2r, w3r, b3s)


def _round_up(x, m):
    return ((x + m - 1) // m) * m


@functools.partial(jax.jit, static_argnames=("tile_b",))
def value_net_forward(state, action, prepped, *, tile_b=512):
    """state: (B, S), action: (B, A), prepped from prepare_params -> q: (B, 1)"""
    w1_s, w1_a, b1r, w2c, b2r, w3r, b3s = prepped
    B, S = state.shape
    _, A = action.shape
    H = w2c.shape[1]
    K = S + A

    # Lane-dense batch tiles (multiples of 128); keep >=2 grid steps when the
    # padded batch allows so v7x can split the batch across both TensorCores.
    B_pad = _round_up(B, 128)
    if B_pad >= 256:
        tb = min(tile_b, _round_up(B_pad // 2, 128))
    else:
        tb = B_pad
    tb = max(128, _round_up(tb, 128))
    B_pad = _round_up(B_pad, tb)
    num_tiles = B_pad // tb

    state_p = jnp.pad(state.astype(jnp.float32), ((0, B_pad - B), (0, 0)))
    action_p = jnp.pad(action.astype(jnp.float32), ((0, B_pad - B), (0, 0)))

    w_bytes = w2c.dtype.itemsize
    cost = pl.CostEstimate(
        flops=2 * B_pad * (K * H + H * H + H),
        transcendentals=0,
        bytes_accessed=((state_p.size + action_p.size + B_pad) * 4
                        + (S * H + A * H + H * H + H) * w_bytes
                        + (2 * H + 1) * 4),
    )

    q_row = pl.pallas_call(
        value_net_kernel,
        out_shape=jax.ShapeDtypeStruct((1, B_pad), jnp.float32),
        grid=(num_tiles,),
        in_specs=[
            pl.BlockSpec((tb, S), lambda i: (i, 0)),   # state: batch-tiled
            pl.BlockSpec((tb, A), lambda i: (i, 0)),   # action: batch-tiled
            pl.BlockSpec((S, H), lambda i: (0, 0)),    # W1[:S]  (VMEM-resident)
            pl.BlockSpec((A, H), lambda i: (0, 0)),    # W1[S:]  (VMEM-resident)
            pl.BlockSpec((1, H), lambda i: (0, 0)),    # b1      (VMEM-resident)
            pl.BlockSpec((H, H), lambda i: (0, 0)),    # W2      (VMEM-resident)
            pl.BlockSpec((1, H), lambda i: (0, 0)),    # b2      (VMEM-resident)
            pl.BlockSpec((1, H), lambda i: (0, 0)),    # w3 row  (VMEM-resident)
            pl.BlockSpec(memory_space=pltpu.SMEM),     # b3 scalar
        ],
        out_specs=pl.BlockSpec((1, tb), lambda i: (0, i)),
        compiler_params=pltpu.CompilerParams(
            dimension_semantics=("parallel",)),
        cost_estimate=cost,
    )(state_p, action_p, w1_s, w1_a, b1r, w2c, b2r, w3r, b3s)

    return q_row[0, :B].reshape(B, 1)


def init_params(key, state_dim, action_dim, hidden_dim):
    """Deterministic init mimicking nn.Linear's U(-1/sqrt(fan_in), 1/sqrt(fan_in))."""
    def linear(k, fan_in, fan_out):
        kw, kb = jax.random.split(k)
        bound = 1.0 / jnp.sqrt(fan_in)
        w = jax.random.uniform(kw, (fan_in, fan_out), jnp.float32, -bound, bound)
        b = jax.random.uniform(kb, (fan_out,), jnp.float32, -bound, bound)
        return w, b

    k1, k2, k3 = jax.random.split(key, 3)
    w1, b1 = linear(k1, state_dim + action_dim, hidden_dim)
    w2, b2 = linear(k2, hidden_dim, hidden_dim)
    w3, b3 = linear(k3, hidden_dim, 1)
    return (w1, b1, w2, b2, w3, b3)


def value_net_ref(state, action, params):
    """Pure-JAX reference for correctness checking."""
    w1, b1, w2, b2, w3, b3 = params
    x = jnp.concatenate([state, action], axis=1)
    x = jnp.maximum(x @ w1 + b1, 0.0)
    x = jnp.maximum(x @ w2 + b2, 0.0)
    return x @ w3 + b3


if __name__ == "__main__":
    # Pendulum-v1: state_space_size=3, action_space_size=1, hidden_dim=128,
    # batch_size=64 (from Params).
    STATE_DIM, ACTION_DIM, HIDDEN_DIM, BATCH = 3, 1, 128, 64

    key = jax.random.PRNGKey(0)
    k_params, k_state, k_action = jax.random.split(key, 3)

    params = init_params(k_params, STATE_DIM, ACTION_DIM, HIDDEN_DIM)
    state = jax.random.normal(k_state, (BATCH, STATE_DIM), jnp.float32)
    action = jax.random.normal(k_action, (BATCH, ACTION_DIM), jnp.float32)

    q_ref = value_net_ref(state, action, params)

    # f32 path: exact check (single grid step, tile_b=128).
    prepped_f32 = prepare_params(params, STATE_DIM, use_bf16=False)
    q_f32 = jax.block_until_ready(value_net_forward(state, action, prepped_f32))
    assert q_f32.shape == (BATCH, 1)
    assert jnp.allclose(q_f32, q_ref, atol=1e-5, rtol=1e-5), "f32 mismatch vs reference"

    # bf16 path (default): loose tolerance vs f32 reference.
    prepped_bf16 = prepare_params(params, STATE_DIM)  # use_bf16=True
    q_bf16 = jax.block_until_ready(value_net_forward(state, action, prepped_bf16))
    assert q_bf16.shape == (BATCH, 1)
    assert jnp.allclose(q_bf16, q_ref, atol=5e-2, rtol=5e-2), "bf16 mismatch vs reference"

    # Larger replay-buffer-style batch: exercises the multi-tile batch grid
    # (grid=(2,), 256-row tiles) and batch padding, on both dtype paths.
    BIG = 500
    kb_s, kb_a = jax.random.split(jax.random.PRNGKey(1))
    state_big = jax.random.normal(kb_s, (BIG, STATE_DIM), jnp.float32)
    action_big = jax.random.normal(kb_a, (BIG, ACTION_DIM), jnp.float32)
    q_big_ref = value_net_ref(state_big, action_big, params)

    q_big_f32 = jax.block_until_ready(
        value_net_forward(state_big, action_big, prepped_f32))
    assert q_big_f32.shape == (BIG, 1)
    assert jnp.allclose(q_big_f32, q_big_ref, atol=1e-5, rtol=1e-5), \
        "f32 mismatch vs reference (big batch)"

    q_big_bf16 = jax.block_until_ready(
        value_net_forward(state_big, action_big, prepped_bf16))
    assert jnp.allclose(q_big_bf16, q_big_ref, atol=5e-2, rtol=5e-2), \
        "bf16 mismatch vs reference (big batch)"

    print("KERNEL_OK")
</pallas_src>

<mosaic_0001>
module attributes {stable_mosaic.version = 11 : i64} {
  func.func @value_net_kernel(%arg0: i32, %arg1: memref<128x3xf32, #tpu.memory_space<vmem>>, %arg2: memref<128x1xf32, #tpu.memory_space<vmem>>, %arg3: memref<3x128xf32, #tpu.memory_space<vmem>>, %arg4: memref<1x128xf32, #tpu.memory_space<vmem>>, %arg5: memref<1x128xf32, #tpu.memory_space<vmem>>, %arg6: memref<128x128xf32, #tpu.memory_space<vmem>>, %arg7: memref<1x128xf32, #tpu.memory_space<vmem>>, %arg8: memref<1x128xf32, #tpu.memory_space<vmem>>, %arg9: memref<1xf32, #tpu.memory_space<smem>>, %arg10: memref<1x128xf32, #tpu.memory_space<vmem>>) attributes {dimension_semantics = [#tpu.dimension_semantics<parallel>], iteration_bounds = array<i64: 1>, scalar_prefetch = 0 : i64, scratch_operands = 0 : i64, tpu.core_type = #tpu.core_type<tc>, window_params = [{transform_indices = @transform_0, window_bounds = array<i64: 128, 3>}, {transform_indices = @transform_1, window_bounds = array<i64: 128, 1>}, {pipeline_mode = #tpu.pipeline_mode<synchronous>, transform_indices = @transform_2, window_bounds = array<i64: 3, 128>}, {pipeline_mode = #tpu.pipeline_mode<synchronous>, transform_indices = @transform_3, window_bounds = array<i64: 1, 128>}, {pipeline_mode = #tpu.pipeline_mode<synchronous>, transform_indices = @transform_4, window_bounds = array<i64: 1, 128>}, {pipeline_mode = #tpu.pipeline_mode<synchronous>, transform_indices = @transform_5, window_bounds = array<i64: 128, 128>}, {pipeline_mode = #tpu.pipeline_mode<synchronous>, transform_indices = @transform_6, window_bounds = array<i64: 1, 128>}, {pipeline_mode = #tpu.pipeline_mode<synchronous>, transform_indices = @transform_7, window_bounds = array<i64: 1, 128>}, {transform_indices = @transform_8, window_bounds = array<i64: 1>}, {transform_indices = @transform_9, window_bounds = array<i64: 1, 128>}]} {
    %c0 = arith.constant 0 : index
    %c0_0 = arith.constant 0 : index
    %0 = vector.load %arg1[%c0, %c0_0] : memref<128x3xf32, #tpu.memory_space<vmem>>, vector<128x3xf32>
    %c0_1 = arith.constant 0 : index
    %c0_2 = arith.constant 0 : index
    %1 = vector.load %arg3[%c0_1, %c0_2] : memref<3x128xf32, #tpu.memory_space<vmem>>, vector<3x128xf32>
    %cst = arith.constant dense<0.000000e+00> : vector<128x128xf32>
    %2 = tpu.matmul %0, %1, %cst {dimension_numbers = #tpu.dot_dimension_numbers<[1], [0], [0], [1], [0, 0, 1, 1], [], []>} : vector<128x3xf32>, vector<3x128xf32>, vector<128x128xf32> -> vector<128x128xf32>
    %c0_3 = arith.constant 0 : index
    %c0_4 = arith.constant 0 : index
    %3 = vector.load %arg2[%c0_3, %c0_4] : memref<128x1xf32, #tpu.memory_space<vmem>>, vector<128x1xf32>
    %c0_5 = arith.constant 0 : index
    %c0_6 = arith.constant 0 : index
    %4 = vector.load %arg4[%c0_5, %c0_6] : memref<1x128xf32, #tpu.memory_space<vmem>>, vector<1x128xf32>
    %5 = vector.broadcast %3 : vector<128x1xf32> to vector<128x128xf32>
    %6 = vector.broadcast %4 : vector<1x128xf32> to vector<128x128xf32>
    %7 = arith.mulf %5, %6 : vector<128x128xf32>
    %8 = arith.addf %2, %7 : vector<128x128xf32>
    %c0_7 = arith.constant 0 : index
    %c0_8 = arith.constant 0 : index
    %9 = vector.load %arg5[%c0_7, %c0_8] : memref<1x128xf32, #tpu.memory_space<vmem>>, vector<1x128xf32>
    %10 = vector.broadcast %9 : vector<1x128xf32> to vector<128x128xf32>
    %11 = arith.addf %8, %10 : vector<128x128xf32>
    %cst_9 = arith.constant 0.000000e+00 : f32
    %12 = vector.broadcast %cst_9 : f32 to vector<128x128xf32>
    %13 = arith.maximumf %11, %12 : vector<128x128xf32>
    %c0_10 = arith.constant 0 : index
    %c0_11 = arith.constant 0 : index
    %14 = vector.load %arg6[%c0_10, %c0_11] : memref<128x128xf32, #tpu.memory_space<vmem>>, vector<128x128xf32>
    %cst_12 = arith.constant dense<0.000000e+00> : vector<128x128xf32>
    %15 = tpu.matmul %13, %14, %cst_12 {dimension_numbers = #tpu.dot_dimension_numbers<[1], [0], [0], [1], [0, 0, 1, 1], [], []>} : vector<128x128xf32>, vector<128x128xf32>, vector<128x128xf32> -> vector<128x128xf32>
    %c0_13 = arith.constant 0 : index
    %c0_14 = arith.constant 0 : index
    %16 = vector.load %arg7[%c0_13, %c0_14] : memref<1x128xf32, #tpu.memory_space<vmem>>, vector<1x128xf32>
    %17 = vector.broadcast %16 : vector<1x128xf32> to vector<128x128xf32>
    %18 = arith.addf %15, %17 : vector<128x128xf32>
    %cst_15 = arith.constant 0.000000e+00 : f32
    %19 = vector.broadcast %cst_15 : f32 to vector<128x128xf32>
    %20 = arith.maximumf %18, %19 : vector<128x128xf32>
    %c0_16 = arith.constant 0 : index
    %c0_17 = arith.constant 0 : index
    %21 = vector.load %arg8[%c0_16, %c0_17] : memref<1x128xf32, #tpu.memory_space<vmem>>, vector<1x128xf32>
    %cst_18 = arith.constant dense<0.000000e+00> : vector<1x128xf32>
    %22 = tpu.matmul %21, %20, %cst_18 {dimension_numbers = #tpu.dot_dimension_numbers<[1], [1], [0], [0], [0, 0, 1, 0], [], []>} : vector<1x128xf32>, vector<128x128xf32>, vector<1x128xf32> -> vector<1x128xf32>
    %c0_19 = arith.constant 0 : index
    %23 = memref.load %arg9[%c0_19] : memref<1xf32, #tpu.memory_space<smem>>
    %24 = vector.broadcast %23 : f32 to vector<1x128xf32>
    %25 = arith.addf %22, %24 : vector<1x128xf32>
    %c0_20 = arith.constant 0 : index
    %c0_21 = arith.constant 0 : index
    %26 = vector.load %arg10[%c0_20, %c0_21] : memref<1x128xf32, #tpu.memory_space<vmem>>, vector<1x128xf32>
    tpu.vector_store %arg10[%c0_20, %c0_21], %25 {strides = array<i32>} : memref<1x128xf32, #tpu.memory_space<vmem>>, vector<1x128xf32>,
    return
  }
  func.func @transform_0(%arg0: i32) -> (i32, i32) {
    %c0_i32 = arith.constant 0 : i32
    %c0_i32_0 = arith.constant 0 : i32
    return %arg0, %c0_i32 : i32, i32
  }
  func.func @transform_1(%arg0: i32) -> (i32, i32) {
    %c0_i32 = arith.constant 0 : i32
    %c0_i32_0 = arith.constant 0 : i32
    return %arg0, %c0_i32 : i32, i32
  }
  func.func @transform_2(%arg0: i32) -> (i32, i32) {
    %c0_i32 = arith.constant 0 : i32
    %c0_i32_0 = arith.constant 0 : i32
    %c0_i32_1 = arith.constant 0 : i32
    return %c0_i32, %c0_i32_0 : i32, i32
  }
  func.func @transform_3(%arg0: i32) -> (i32, i32) {
    %c0_i32 = arith.constant 0 : i32
    %c0_i32_0 = arith.constant 0 : i32
    %c0_i32_1 = arith.constant 0 : i32
    return %c0_i32, %c0_i32_0 : i32, i32
  }
  func.func @transform_4(%arg0: i32) -> (i32, i32) {
    %c0_i32 = arith.constant 0 : i32
    %c0_i32_0 = arith.constant 0 : i32
    %c0_i32_1 = arith.constant 0 : i32
    return %c0_i32, %c0_i32_0 : i32, i32
  }
  func.func @transform_5(%arg0: i32) -> (i32, i32) {
    %c0_i32 = arith.constant 0 : i32
    %c0_i32_0 = arith.constant 0 : i32
    %c0_i32_1 = arith.constant 0 : i32
    return %c0_i32, %c0_i32_0 : i32, i32
  }
  func.func @transform_6(%arg0: i32) -> (i32, i32) {
    %c0_i32 = arith.constant 0 : i32
    %c0_i32_0 = arith.constant 0 : i32
    %c0_i32_1 = arith.constant 0 : i32
    return %c0_i32, %c0_i32_0 : i32, i32
  }
  func.func @transform_7(%arg0: i32) -> (i32, i32) {
    %c0_i32 = arith.constant 0 : i32
    %c0_i32_0 = arith.constant 0 : i32
    %c0_i32_1 = arith.constant 0 : i32
    return %c0_i32, %c0_i32_0 : i32, i32
  }
  func.func @transform_8(%arg0: i32) -> i32 {
    %c0_i32 = arith.constant 0 : i32
    %c0_i32_0 = arith.constant 0 : i32
    return %c0_i32 : i32
  }
  func.func @transform_9(%arg0: i32) -> (i32, i32) {
    %c0_i32 = arith.constant 0 : i32
    %c0_i32_0 = arith.constant 0 : i32
    return %c0_i32, %arg0 : i32, i32
  }
}

</mosaic_0001>

<llo_original>
// kernel: value_net_forward.1
$region0: #{value_net_forward.1}
  #allocation0 [shape = 'u32[]', space=smem, size = 0x4, offset = 0x4, fixed_abs, tag = 'smem constant byte address 0x4 - core index']
  #allocation1 [shape = 'u32[144,128]{1,0:T(1,128)}', space=vmem, size = 0x12000, scoped, tag = 'internal scratch']
  #allocation2 [shape = 'f32[1]{0:T(128)S(6)}', space=smem, size = 0x200, scoped, tag = 'scoped memory for value_net_forward.1']
  %s0 = inlined_call_operand.vmem [shape: f32[128,3], index: 0, kind: input, shape index: {}]
  %s1 = inlined_call_operand.vmem [shape: f32[128,1], index: 1, kind: input, shape index: {}]
  %s2 = inlined_call_operand.vmem [shape: f32[3,128], index: 2, kind: input, shape index: {}]
  %s3 = inlined_call_operand.vmem [shape: f32[1,128], index: 3, kind: input, shape index: {}]
  %s4 = inlined_call_operand.vmem [shape: f32[1,128], index: 4, kind: input, shape index: {}]
  %s5 = inlined_call_operand.vmem [shape: f32[128,128], index: 5, kind: input, shape index: {}]
  %s6 = inlined_call_operand.vmem [shape: f32[1,128], index: 6, kind: input, shape index: {}]
  %s7 = inlined_call_operand.vmem [shape: f32[1,128], index: 7, kind: input, shape index: {}]
  %s8 = inlined_call_operand.<no memory space> [shape: f32[1], index: 8, kind: input, shape index: {}]
  %s9 = inlined_call_operand.vmem [shape: f32[1,128], index: 9, kind: output, shape index: {}]
  %s10 = sld [smem:[#allocation0]]
  $region46: #{value_net_forward.1} parent=0
    _
  %s12 = ssub.s32 1, %s10
  %s13 = scalar_select 0, %s12, %s10
  %14 = sst [smem:[#allocation2]] %s8
  // Predicated region
  $region2: #{value_net_forward.1} parent=0 // pred_check
    _
  $region3: #{value_net_forward.1} parent=0 // pred_check_branch
    %16 = sbr.rel (0) target = $region5
  $region4: #{value_net_forward.1} parent=0 // pred_region
    _
  $region5: #{value_net_forward.1} parent=0 // pred_fallthru
    _
  // Predicated region
  $region6: #{value_net_forward.1} parent=0 // pred_check
    _
  $region7: #{value_net_forward.1} parent=0 // pred_check_branch
    %18 = sbr.rel (0) target = $region9
  $region8: #{value_net_forward.1} parent=0 // pred_region
    _
  $region9: #{value_net_forward.1} parent=0 // pred_fallthru
    _
  // Predicated region
  $region10: #{value_net_forward.1} parent=0 // pred_check
    _
  $region11: #{value_net_forward.1} parent=0 // pred_check_branch
    %20 = sbr.rel (0) target = $region13
  $region12: #{value_net_forward.1} parent=0 // pred_region
    _
  $region13: #{value_net_forward.1} parent=0 // pred_fallthru
    _
  // Predicated region
  $region14: #{value_net_forward.1} parent=0 // pred_check
    _
  $region15: #{value_net_forward.1} parent=0 // pred_check_branch
    %22 = sbr.rel (0) target = $region17
  $region16: #{value_net_forward.1} parent=0 // pred_region
    _
  $region17: #{value_net_forward.1} parent=0 // pred_fallthru
    _
  // Predicated region
  $region18: #{value_net_forward.1} parent=0 // pred_check
    _
  $region19: #{value_net_forward.1} parent=0 // pred_check_branch
    %24 = sbr.rel (0) target = $region21
  $region20: #{value_net_forward.1} parent=0 // pred_region
    _
  $region21: #{value_net_forward.1} parent=0 // pred_fallthru
    _
  // Predicated region
  $region22: #{value_net_forward.1} parent=0 // pred_check
    _
  $region23: #{value_net_forward.1} parent=0 // pred_check_branch
    %26 = sbr.rel (0) target = $region25
  $region24: #{value_net_forward.1} parent=0 // pred_region
    _
  $region25: #{value_net_forward.1} parent=0 // pred_fallthru
    _
  // Predicated region
  $region26: #{value_net_forward.1} parent=0 // pred_check
    _
  $region27: #{value_net_forward.1} parent=0 // pred_check_branch
    %28 = sbr.rel (0) target = $region29
  $region28: #{value_net_forward.1} parent=0 // pred_region
    _
  $region29: #{value_net_forward.1} parent=0 // pred_fallthru
    _
  // Predicated region
  $region30: #{value_net_forward.1} parent=0 // pred_check
    _
  $region31: #{value_net_forward.1} parent=0 // pred_check_branch
    %30 = sbr.rel (0) target = $region33
  $region32: #{value_net_forward.1} parent=0 // pred_region
    _
  $region33: #{value_net_forward.1} parent=0 // pred_fallthru
    _
  // Predicated region
  $region34: #{value_net_forward.1} parent=0 // pred_check
    _
  $region35: #{value_net_forward.1} parent=0 // pred_check_branch
    %32 = sbr.rel (0) target = $region37
  $region36: #{value_net_forward.1} parent=0 // pred_region
    _
  $region37: #{value_net_forward.1} parent=0 // pred_fallthru
    _
  %v33 = vld [vmem:[%s0] sm:$0xff]
  %v34 = vld [vmem:[%s0 + $0x8] sm:$0xff]
  %v35 = vld [vmem:[%s0 + $0x10] sm:$0xff]
  %v36 = vld [vmem:[%s0 + $0x18] sm:$0xff]
  %v37 = vld [vmem:[%s0 + $0x20] sm:$0xff]
  %v38 = vld [vmem:[%s0 + $0x28] sm:$0xff]
  %v39 = vld [vmem:[%s0 + $0x30] sm:$0xff]
  %v40 = vld [vmem:[%s0 + $0x38] sm:$0xff]
  %v41 = vld [vmem:[%s0 + $0x40] sm:$0xff]
  %v42 = vld [vmem:[%s0 + $0x48] sm:$0xff]
  %v43 = vld [vmem:[%s0 + $0x50] sm:$0xff]
  %v44 = vld [vmem:[%s0 + $0x58] sm:$0xff]
  %v45 = vld [vmem:[%s0 + $0x60] sm:$0xff]
  %v46 = vld [vmem:[%s0 + $0x68] sm:$0xff]
  %v47 = vld [vmem:[%s0 + $0x70] sm:$0xff]
  %v48 = vld [vmem:[%s0 + $0x78] sm:$0xff]
  %v49 = vld [vmem:[%s2] sm:$0x7]
  %v50 = vld [vmem:[%s1] sm:$0xff]
  %v51 = vld [vmem:[%s1 + $0x8] sm:$0xff]
  %v52 = vld [vmem:[%s1 + $0x10] sm:$0xff]
  %v53 = vld [vmem:[%s1 + $0x18] sm:$0xff]
  %v54 = vld [vmem:[%s1 + $0x20] sm:$0xff]
  %v55 = vld [vmem:[%s1 + $0x28] sm:$0xff]
  %v56 = vld [vmem:[%s1 + $0x30] sm:$0xff]
  %v57 = vld [vmem:[%s1 + $0x38] sm:$0xff]
  %v58 = vld [vmem:[%s1 + $0x40] sm:$0xff]
  %v59 = vld [vmem:[%s1 + $0x48] sm:$0xff]
  %v60 = vld [vmem:[%s1 + $0x50] sm:$0xff]
  %v61 = vld [vmem:[%s1 + $0x58] sm:$0xff]
  %v62 = vld [vmem:[%s1 + $0x60] sm:$0xff]
  %v63 = vld [vmem:[%s1 + $0x68] sm:$0xff]
  %v64 = vld [vmem:[%s1 + $0x70] sm:$0xff]
  %v65 = vld [vmem:[%s1 + $0x78] sm:$0xff]
  %v66 = vld [vmem:[%s3] sm:$0x1]
  %68 = vset.pattern.permute.xlu0 0
  %69 = vperm.xlu0 %68, %v50
  %v70 = vpop.permute.xlu0 %69
  %73 = vset.pattern.permute.xlu0 0
  %74 = vperm.xlu0 %73, %v51
  %v75 = vpop.permute.xlu0 %74
  %78 = vset.pattern.permute.xlu0 0
  %79 = vperm.xlu0 %78, %v52
  %v80 = vpop.permute.xlu0 %79
  %83 = vset.pattern.permute.xlu0 0
  %84 = vperm.xlu0 %83, %v53
  %v85 = vpop.permute.xlu0 %84
  %88 = vset.pattern.permute.xlu0 0
  %89 = vperm.xlu0 %88, %v54
  %v90 = vpop.permute.xlu0 %89
  %93 = vset.pattern.permute.xlu0 0
  %94 = vperm.xlu0 %93, %v55
  %v95 = vpop.permute.xlu0 %94
  %98 = vset.pattern.permute.xlu0 0
  %99 = vperm.xlu0 %98, %v56
  %v100 = vpop.permute.xlu0 %99
  %103 = vset.pattern.permute.xlu0 0
  %104 = vperm.xlu0 %103, %v57
  %v105 = vpop.permute.xlu0 %104
  %108 = vset.pattern.permute.xlu0 0
  %109 = vperm.xlu0 %108, %v58
  %v110 = vpop.permute.xlu0 %109
  %113 = vset.pattern.permute.xlu0 0
  %114 = vperm.xlu0 %113, %v59
  %v115 = vpop.permute.xlu0 %114
  %118 = vset.pattern.permute.xlu0 0
  %119 = vperm.xlu0 %118, %v60
  %v120 = vpop.permute.xlu0 %119
  %123 = vset.pattern.permute.xlu0 0
  %124 = vperm.xlu0 %123, %v61
  %v125 = vpop.permute.xlu0 %124
  %128 = vset.pattern.permute.xlu0 0
  %129 = vperm.xlu0 %128, %v62
  %v130 = vpop.permute.xlu0 %129
  %133 = vset.pattern.permute.xlu0 0
  %134 = vperm.xlu0 %133, %v63
  %v135 = vpop.permute.xlu0 %134
  %138 = vset.pattern.permute.xlu0 0
  %139 = vperm.xlu0 %138, %v64
  %v140 = vpop.permute.xlu0 %139
  %143 = vset.pattern.permute.xlu0 0
  %144 = vperm.xlu0 %143, %v65
  %v145 = vpop.permute.xlu0 %144
  %v148 = vlaneseq
  %v149 = vshrl.u32 %v148, 7
  %v150 = vsub.s32 0, %v149
  %v151 = vrot.slane %v66, %v150
  %v153 = vmul.f32 %v70, %v151
  %v154 = vmul.f32 %v75, %v151
  %v155 = vmul.f32 %v80, %v151
  %v156 = vmul.f32 %v85, %v151
  %v157 = vmul.f32 %v90, %v151
  %v158 = vmul.f32 %v95, %v151
  %v159 = vmul.f32 %v100, %v151
  %v160 = vmul.f32 %v105, %v151
  %v161 = vmul.f32 %v110, %v151
  %v162 = vmul.f32 %v115, %v151
  %v163 = vmul.f32 %v120, %v151
  %v164 = vmul.f32 %v125, %v151
  %v165 = vmul.f32 %v130, %v151
  %v166 = vmul.f32 %v135, %v151
  %v167 = vmul.f32 %v140, %v151
  %v168 = vmul.f32 %v145, %v151
  %vm169 = vcmask 23552
  %v171 = vsel %vm169, %v33, 0
  %v174 = vsel %vm169, %v34, 0
  %v177 = vsel %vm169, %v35, 0
  %v180 = vsel %vm169, %v36, 0
  %v183 = vsel %vm169, %v37, 0
  %v186 = vsel %vm169, %v38, 0
  %v189 = vsel %vm169, %v39, 0
  %v192 = vsel %vm169, %v40, 0
  %v195 = vsel %vm169, %v41, 0
  %v198 = vsel %vm169, %v42, 0
  %v201 = vsel %vm169, %v43, 0
  %v204 = vsel %vm169, %v44, 0
  %v207 = vsel %vm169, %v45, 0
  %v210 = vsel %vm169, %v46, 0
  %v213 = vsel %vm169, %v47, 0
  %v216 = vsel %vm169, %v48, 0
  %vm218 = vcmask 1042432
  %v220 = vsel %vm218, %v49, 0
  %222 = vmatprep.subr.mxu0 0.0
  %223 = vmatpush1.msra.mxu0 0.0
  %224 = vmatprep.subr.mxu0 0.0
  %225 = vmatpush1.msra.mxu0 0.0
  %226 = vmatprep.subr.mxu0 0.0
  %227 = vmatpush1.msra.mxu0 0.0
  %228 = vmatprep.subr.mxu0 0.0
  %229 = vmatpush1.msra.mxu0 0.0
  %230 = vmatprep.subr.mxu0 0.0
  %231 = vmatpush1.msra.mxu0 0.0
  %232 = vmatprep.subr.mxu0 0.0
  %233 = vmatpush1.msra.mxu0 0.0
  %234 = vmatprep.subr.mxu0 0.0
  %235 = vmatpush1.msra.mxu0 0.0
  %236 = vmatprep.subr.mxu0 0.0
  %237 = vmatpush1.msra.mxu0 0.0
  %238 = vmatprep.subr.mxu0 0.0
  %239 = vmatpush1.msra.mxu0 0.0
  %240 = vmatprep.subr.mxu0 0.0
  %241 = vmatpush1.msra.mxu0 0.0
  %242 = vmatprep.subr.mxu0 0.0
  %243 = vmatpush1.msra.mxu0 0.0
  %244 = vmatprep.subr.mxu0 0.0
  %245 = vmatpush1.msra.mxu0 0.0
  %246 = vmatprep.subr.mxu0 0.0
  %247 = vmatpush1.msra.mxu0 0.0
  %248 = vmatprep.subr.mxu0 0.0
  %249 = vmatpush1.msra.mxu0 0.0
  %250 = vmatprep.subr.mxu0 0.0
  %251 = vmatpush1.msra.mxu0 0.0
  %252 = vmatprep.subr.mxu0 0.0
  %253 = vmatpush1.msra.mxu0 %v220
  %254 = vmatprep.subr.mxu0 0.0
  %255 = vmatpush2.msra.mxu0 0.0
  %256 = vmatprep.subr.mxu0 0.0
  %257 = vmatpush2.msra.mxu0 0.0
  %258 = vmatprep.subr.mxu0 0.0
  %259 = vmatpush2.msra.mxu0 0.0
  %260 = vmatprep.subr.mxu0 0.0
  %261 = vmatpush2.msra.mxu0 0.0
  %262 = vmatprep.subr.mxu0 0.0
  %263 = vmatpush2.msra.mxu0 0.0
  %264 = vmatprep.subr.mxu0 0.0
  %265 = vmatpush2.msra.mxu0 0.0
  %266 = vmatprep.subr.mxu0 0.0
  %267 = vmatpush2.msra.mxu0 0.0
  %268 = vmatprep.subr.mxu0 0.0
  %269 = vmatpush2.msra.mxu0 0.0
  %270 = vmatprep.subr.mxu0 0.0
  %271 = vmatpush2.msra.mxu0 0.0
  %272 = vmatprep.subr.mxu0 0.0
  %273 = vmatpush2.msra.mxu0 0.0
  %274 = vmatprep.subr.mxu0 0.0
  %275 = vmatpush2.msra.mxu0 0.0
  %276 = vmatprep.subr.mxu0 0.0
  %277 = vmatpush2.msra.mxu0 0.0
  %278 = vmatprep.subr.mxu0 0.0
  %279 = vmatpush2.msra.mxu0 0.0
  %280 = vmatprep.subr.mxu0 0.0
  %281 = vmatpush2.msra.mxu0 0.0
  %282 = vmatprep.subr.mxu0 0.0
  %283 = vmatpush2.msra.mxu0 0.0
  %284 = vmatprep.subr.mxu0 0.0
  %285 = vmatpush2.msra.mxu0 0.0
  %286 = vmatprep.mubr.f32.mxu0 0.0
  %287 = vmatmul.mubr.f32.gmra.mxu0 %v171
  %v288 = vpop.f32.mrf.mxu0
  %v289 = vadd.f32 %v153, %v288
  %v290 = vpop.f32.mrf.mxu0
  %291 = vmatprep.mubr.f32.mxu0 0.0
  %292 = vmatmul.mubr.f32.gmra.mxu0 %v174
  %v293 = vpop.f32.mrf.mxu0
  %v294 = vadd.f32 %v154, %v293
  %v295 = vpop.f32.mrf.mxu0
  %296 = vmatprep.mubr.f32.mxu0 0.0
  %297 = vmatmul.mubr.f32.gmra.mxu0 %v177
  %v298 = vpop.f32.mrf.mxu0
  %v299 = vadd.f32 %v155, %v298
  %v300 = vpop.f32.mrf.mxu0
  %301 = vmatprep.mubr.f32.mxu0 0.0
  %302 = vmatmul.mubr.f32.gmra.mxu0 %v180
  %v303 = vpop.f32.mrf.mxu0
  %v304 = vadd.f32 %v156, %v303
  %v305 = vpop.f32.mrf.mxu0
  %306 = vmatprep.mubr.f32.mxu0 0.0
  %307 = vmatmul.mubr.f32.gmra.mxu0 %v183
  %v308 = vpop.f32.mrf.mxu0
  %v309 = vadd.f32 %v157, %v308
  %v310 = vpop.f32.mrf.mxu0
  %311 = vmatprep.mubr.f32.mxu0 0.0
  %312 = vmatmul.mubr.f32.gmra.mxu0 %v186
  %v313 = vpop.f32.mrf.mxu0
  %v314 = vadd.f32 %v158, %v313
  %v315 = vpop.f32.mrf.mxu0
  %316 = vmatprep.mubr.f32.mxu0 0.0
  %317 = vmatmul.mubr.f32.gmra.mxu0 %v189
  %v318 = vpop.f32.mrf.mxu0
  %v319 = vadd.f32 %v159, %v318
  %v320 = vpop.f32.mrf.mxu0
  %321 = vmatprep.mubr.f32.mxu0 0.0
  %322 = vmatmul.mubr.f32.gmra.mxu0 %v192
  %v323 = vpop.f32.mrf.mxu0
  %v324 = vadd.f32 %v160, %v323
  %v325 = vpop.f32.mrf.mxu0
  %326 = vmatprep.mubr.f32.mxu0 0.0
  %327 = vmatmul.mubr.f32.gmra.mxu0 %v195
  %v328 = vpop.f32.mrf.mxu0
  %v329 = vadd.f32 %v161, %v328
  %v330 = vpop.f32.mrf.mxu0
  %331 = vmatprep.mubr.f32.mxu0 0.0
  %332 = vmatmul.mubr.f32.gmra.mxu0 %v198
  %v333 = vpop.f32.mrf.mxu0
  %v334 = vadd.f32 %v162, %v333
  %v335 = vpop.f32.mrf.mxu0
  %336 = vmatprep.mubr.f32.mxu0 0.0
  %337 = vmatmul.mubr.f32.gmra.mxu0 %v201
  %v338 = vpop.f32.mrf.mxu0
  %v339 = vadd.f32 %v163, %v338
  %v340 = vpop.f32.mrf.mxu0
  %341 = vmatprep.mubr.f32.mxu0 0.0
  %342 = vmatmul.mubr.f32.gmra.mxu0 %v204
  %v343 = vpop.f32.mrf.mxu0
  %v344 = vadd.f32 %v164, %v343
  %v345 = vpop.f32.mrf.mxu0
  %346 = vmatprep.mubr.f32.mxu0 0.0
  %347 = vmatmul.mubr.f32.gmra.mxu0 %v207
  %v348 = vpop.f32.mrf.mxu0
  %v349 = vadd.f32 %v165, %v348
  %v350 = vpop.f32.mrf.mxu0
  %351 = vmatprep.mubr.f32.mxu0 0.0
  %352 = vmatmul.mubr.f32.gmra.mxu0 %v210
  %v353 = vpop.f32.mrf.mxu0
  %v354 = vadd.f32 %v166, %v353
  %v355 = vpop.f32.mrf.mxu0
  %356 = vmatprep.mubr.f32.mxu0 0.0
  %357 = vmatmul.mubr.f32.gmra.mxu0 %v213
  %v358 = vpop.f32.mrf.mxu0
  %v359 = vadd.f32 %v167, %v358
  %v360 = vpop.f32.mrf.mxu0
  %361 = vmatprep.mubr.f32.mxu0 0.0
  %362 = vmatmul.mubr.f32.gmra.mxu0 %v216
  %v363 = vpop.f32.mrf.mxu0
  %v364 = vadd.f32 %v168, %v363
  %v365 = vpop.f32.mrf.mxu0
  %366 = vdwg.mxu0
  %v367 = vld [vmem:[%s4] sm:$0x1]
  %v369 = vlaneseq
  %v370 = vshrl.u32 %v369, 7
  %v371 = vsub.s32 0, %v370
  %v372 = vrot.slane %v367, %v371
  %v374 = vadd.f32 %v289, %v372
  %v375 = vadd.f32 %v294, %v372
  %v376 = vadd.f32 %v299, %v372
  %v377 = vadd.f32 %v304, %v372
  %v378 = vadd.f32 %v309, %v372
  %v379 = vadd.f32 %v314, %v372
  %v380 = vadd.f32 %v319, %v372
  %v381 = vadd.f32 %v324, %v372
  %v382 = vadd.f32 %v329, %v372
  %v383 = vadd.f32 %v334, %v372
  %v384 = vadd.f32 %v339, %v372
  %v385 = vadd.f32 %v344, %v372
  %v386 = vadd.f32 %v349, %v372
  %v387 = vadd.f32 %v354, %v372
  %v388 = vadd.f32 %v359, %v372
  %v389 = vadd.f32 %v364, %v372
  %v390 = vmax.f32 %v374, 0.0
  %v391 = vmax.f32 %v375, 0.0
  %v392 = vmax.f32 %v376, 0.0
  %v393 = vmax.f32 %v377, 0.0
  %v394 = vmax.f32 %v378, 0.0
  %v395 = vmax.f32 %v379, 0.0
  %v396 = vmax.f32 %v380, 0.0
  %v397 = vmax.f32 %v381, 0.0
  %v398 = vmax.f32 %v382, 0.0
  %v399 = vmax.f32 %v383, 0.0
  %v400 = vmax.f32 %v384, 0.0
  %v401 = vmax.f32 %v385, 0.0
  %v402 = vmax.f32 %v386, 0.0
  %v403 = vmax.f32 %v387, 0.0
  %v404 = vmax.f32 %v388, 0.0
  %v405 = vmax.f32 %v389, 0.0
  %v406 = vld [vmem:[%s5] sm:$0xff]
  %v407 = vld [vmem:[%s5 + $0x8] sm:$0xff]
  %v408 = vld [vmem:[%s5 + $0x10] sm:$0xff]
  %v409 = vld [vmem:[%s5 + $0x18] sm:$0xff]
  %v410 = vld [vmem:[%s5 + $0x20] sm:$0xff]
  %v411 = vld [vmem:[%s5 + $0x28] sm:$0xff]
  %v412 = vld [vmem:[%s5 + $0x30] sm:$0xff]
  %v413 = vld [vmem:[%s5 + $0x38] sm:$0xff]
  %v414 = vld [vmem:[%s5 + $0x40] sm:$0xff]
  %v415 = vld [vmem:[%s5 + $0x48] sm:$0xff]
  %v416 = vld [vmem:[%s5 + $0x50] sm:$0xff]
  %v417 = vld [vmem:[%s5 + $0x58] sm:$0xff]
  %v418 = vld [vmem:[%s5 + $0x60] sm:$0xff]
  %v419 = vld [vmem:[%s5 + $0x68] sm:$0xff]
  %v420 = vld [vmem:[%s5 + $0x70] sm:$0xff]
  %v421 = vld [vmem:[%s5 + $0x78] sm:$0xff]
  %v422 = vld [vmem:[%s6] sm:$0x1]
  %v424 = vlaneseq
  %v425 = vshrl.u32 %v424, 7
  %v426 = vsub.s32 0, %v425
  %v427 = vrot.slane %v422, %v426
  %429 = vmatprep.subr.mxu0 0.0
  %430 = vmatpush1.msra.mxu0 %v421
  %431 = vmatprep.subr.mxu0 0.0
  %432 = vmatpush1.msra.mxu0 %v420
  %433 = vmatprep.subr.mxu0 0.0
  %434 = vmatpush1.msra.mxu0 %v419
  %435 = vmatprep.subr.mxu0 0.0
  %436 = vmatpush1.msra.mxu0 %v418
  %437 = vmatprep.subr.mxu0 0.0
  %438 = vmatpush1.msra.mxu0 %v417
  %439 = vmatprep.subr.mxu0 0.0
  %440 = vmatpush1.msra.mxu0 %v416
  %441 = vmatprep.subr.mxu0 0.0
  %442 = vmatpush1.msra.mxu0 %v415
  %443 = vmatprep.subr.mxu0 0.0
  %444 = vmatpush1.msra.mxu0 %v414
  %445 = vmatprep.subr.mxu0 0.0
  %446 = vmatpush1.msra.mxu0 %v413
  %447 = vmatprep.subr.mxu0 0.0
  %448 = vmatpush1.msra.mxu0 %v412
  %449 = vmatprep.subr.mxu0 0.0
  %450 = vmatpush1.msra.mxu0 %v411
  %451 = vmatprep.subr.mxu0 0.0
  %452 = vmatpush1.msra.mxu0 %v410
  %453 = vmatprep.subr.mxu0 0.0
  %454 = vmatpush1.msra.mxu0 %v409
  %455 = vmatprep.subr.mxu0 0.0
  %456 = vmatpush1.msra.mxu0 %v408
  %457 = vmatprep.subr.mxu0 0.0
  %458 = vmatpush1.msra.mxu0 %v407
  %459 = vmatprep.subr.mxu0 0.0
  %460 = vmatpush1.msra.mxu0 %v406
  %461 = vmatprep.subr.mxu0 0.0
  %462 = vmatpush2.msra.mxu0 0.0
  %463 = vmatprep.subr.mxu0 0.0
  %464 = vmatpush2.msra.mxu0 0.0
  %465 = vmatprep.subr.mxu0 0.0
  %466 = vmatpush2.msra.mxu0 0.0
  %467 = vmatprep.subr.mxu0 0.0
  %468 = vmatpush2.msra.mxu0 0.0
  %469 = vmatprep.subr.mxu0 0.0
  %470 = vmatpush2.msra.mxu0 0.0
  %471 = vmatprep.subr.mxu0 0.0
  %472 = vmatpush2.msra.mxu0 0.0
  %473 = vmatprep.subr.mxu0 0.0
  %474 = vmatpush2.msra.mxu0 0.0
  %475 = vmatprep.subr.mxu0 0.0
  %476 = vmatpush2.msra.mxu0 0.0
  %477 = vmatprep.subr.mxu0 0.0
  %478 = vmatpush2.msra.mxu0 0.0
  %479 = vmatprep.subr.mxu0 0.0
  %480 = vmatpush2.msra.mxu0 0.0
  %481 = vmatprep.subr.mxu0 0.0
  %482 = vmatpush2.msra.mxu0 0.0
  %483 = vmatprep.subr.mxu0 0.0
  %484 = vmatpush2.msra.mxu0 0.0
  %485 = vmatprep.subr.mxu0 0.0
  %486 = vmatpush2.msra.mxu0 0.0
  %487 = vmatprep.subr.mxu0 0.0
  %488 = vmatpush2.msra.mxu0 0.0
  %489 = vmatprep.subr.mxu0 0.0
  %490 = vmatpush2.msra.mxu0 0.0
  %491 = vmatprep.subr.mxu0 0.0
  %492 = vmatpush2.msra.mxu0 0.0
  %493 = vmatprep.mubr.f32.mxu0 0.0
  %494 = vmatmul.mubr.f32.gmra.mxu0 %v390
  %v495 = vpop.f32.mrf.mxu0
  %v496 = vadd.f32 %v427, %v495
  %v497 = vpop.f32.mrf.mxu0
  %498 = vmatprep.mubr.f32.mxu0 0.0
  %499 = vmatmul.mubr.f32.gmra.mxu0 %v391
  %v500 = vpop.f32.mrf.mxu0
  %v501 = vadd.f32 %v427, %v500
  %v502 = vpop.f32.mrf.mxu0
  %503 = vmatprep.mubr.f32.mxu0 0.0
  %504 = vmatmul.mubr.f32.gmra.mxu0 %v392
  %v505 = vpop.f32.mrf.mxu0
  %v506 = vadd.f32 %v427, %v505
  %v507 = vpop.f32.mrf.mxu0
  %508 = vmatprep.mubr.f32.mxu0 0.0
  %509 = vmatmul.mubr.f32.gmra.mxu0 %v393
  %v510 = vpop.f32.mrf.mxu0
  %v511 = vadd.f32 %v427, %v510
  %v512 = vpop.f32.mrf.mxu0
  %513 = vmatprep.mubr.f32.mxu0 0.0
  %514 = vmatmul.mubr.f32.gmra.mxu0 %v394
  %v515 = vpop.f32.mrf.mxu0
  %v516 = vadd.f32 %v427, %v515
  %v517 = vpop.f32.mrf.mxu0
  %518 = vmatprep.mubr.f32.mxu0 0.0
  %519 = vmatmul.mubr.f32.gmra.mxu0 %v395
  %v520 = vpop.f32.mrf.mxu0
  %v521 = vadd.f32 %v427, %v520
  %v522 = vpop.f32.mrf.mxu0
  %523 = vmatprep.mubr.f32.mxu0 0.0
  %524 = vmatmul.mubr.f32.gmra.mxu0 %v396
  %v525 = vpop.f32.mrf.mxu0
  %v526 = vadd.f32 %v427, %v525
  %v527 = vpop.f32.mrf.mxu0
  %528 = vmatprep.mubr.f32.mxu0 0.0
  %529 = vmatmul.mubr.f32.gmra.mxu0 %v397
  %v530 = vpop.f32.mrf.mxu0
  %v531 = vadd.f32 %v427, %v530
  %v532 = vpop.f32.mrf.mxu0
  %533 = vmatprep.mubr.f32.mxu0 0.0
  %534 = vmatmul.mubr.f32.gmra.mxu0 %v398
  %v535 = vpop.f32.mrf.mxu0
  %v536 = vadd.f32 %v427, %v535
  %v537 = vpop.f32.mrf.mxu0
  %538 = vmatprep.mubr.f32.mxu0 0.0
  %539 = vmatmul.mubr.f32.gmra.mxu0 %v399
  %v540 = vpop.f32.mrf.mxu0
  %v541 = vadd.f32 %v427, %v540
  %v542 = vpop.f32.mrf.mxu0
  %543 = vmatprep.mubr.f32.mxu0 0.0
  %544 = vmatmul.mubr.f32.gmra.mxu0 %v400
  %v545 = vpop.f32.mrf.mxu0
  %v546 = vadd.f32 %v427, %v545
  %v547 = vpop.f32.mrf.mxu0
  %548 = vmatprep.mubr.f32.mxu0 0.0
  %549 = vmatmul.mubr.f32.gmra.mxu0 %v401
  %v550 = vpop.f32.mrf.mxu0
  %v551 = vadd.f32 %v427, %v550
  %v552 = vpop.f32.mrf.mxu0
  %553 = vmatprep.mubr.f32.mxu0 0.0
  %554 = vmatmul.mubr.f32.gmra.mxu0 %v402
  %v555 = vpop.f32.mrf.mxu0
  %v556 = vadd.f32 %v427, %v555
  %v557 = vpop.f32.mrf.mxu0
  %558 = vmatprep.mubr.f32.mxu0 0.0
  %559 = vmatmul.mubr.f32.gmra.mxu0 %v403
  %v560 = vpop.f32.mrf.mxu0
  %v561 = vadd.f32 %v427, %v560
  %v562 = vpop.f32.mrf.mxu0
  %563 = vmatprep.mubr.f32.mxu0 0.0
  %564 = vmatmul.mubr.f32.gmra.mxu0 %v404
  %v565 = vpop.f32.mrf.mxu0
  %v566 = vadd.f32 %v427, %v565
  %v567 = vpop.f32.mrf.mxu0
  %568 = vmatprep.mubr.f32.mxu0 0.0
  %569 = vmatmul.mubr.f32.gmra.mxu0 %v405
  %v570 = vpop.f32.mrf.mxu0
  %v571 = vadd.f32 %v427, %v570
  %v572 = vpop.f32.mrf.mxu0
  %573 = vdwg.mxu0
  %v574 = vmax.f32 %v496, 0.0
  %v575 = vmax.f32 %v501, 0.0
  %v576 = vmax.f32 %v506, 0.0
  %v577 = vmax.f32 %v511, 0.0
  %v578 = vmax.f32 %v516, 0.0
  %v579 = vmax.f32 %v521, 0.0
  %v580 = vmax.f32 %v526, 0.0
  %v581 = vmax.f32 %v531, 0.0
  %v582 = vmax.f32 %v536, 0.0
  %v583 = vmax.f32 %v541, 0.0
  %v584 = vmax.f32 %v546, 0.0
  %v585 = vmax.f32 %v551, 0.0
  %v586 = vmax.f32 %v556, 0.0
  %v587 = vmax.f32 %v561, 0.0
  %v588 = vmax.f32 %v566, 0.0
  %v589 = vmax.f32 %v571, 0.0
  %v590 = vld [vmem:[%s7] sm:$0x1]
  %s591 = sld [smem:[#allocation2]]
  %v592 = vstv %s591
  %593 = vmatprep.subr.mxu0 0.0
  %594 = vmatpush1.xpose.msra.mxu0 %v589
  %595 = vmatprep.subr.mxu0 0.0
  %596 = vmatpush1.xpose.msra.mxu0 %v588
  %597 = vmatprep.subr.mxu0 0.0
  %598 = vmatpush1.xpose.msra.mxu0 %v587
  %599 = vmatprep.subr.mxu0 0.0
  %600 = vmatpush1.xpose.msra.mxu0 %v586
  %601 = vmatprep.subr.mxu0 0.0
  %602 = vmatpush1.xpose.msra.mxu0 %v585
  %603 = vmatprep.subr.mxu0 0.0
  %604 = vmatpush1.xpose.msra.mxu0 %v584
  %605 = vmatprep.subr.mxu0 0.0
  %606 = vmatpush1.xpose.msra.mxu0 %v583
  %607 = vmatprep.subr.mxu0 0.0
  %608 = vmatpush1.xpose.msra.mxu0 %v582
  %609 = vmatprep.subr.mxu0 0.0
  %610 = vmatpush1.xpose.msra.mxu0 %v581
  %611 = vmatprep.subr.mxu0 0.0
  %612 = vmatpush1.xpose.msra.mxu0 %v580
  %613 = vmatprep.subr.mxu0 0.0
  %614 = vmatpush1.xpose.msra.mxu0 %v579
  %615 = vmatprep.subr.mxu0 0.0
  %616 = vmatpush1.xpose.msra.mxu0 %v578
  %617 = vmatprep.subr.mxu0 0.0
  %618 = vmatpush1.xpose.msra.mxu0 %v577
  %619 = vmatprep.subr.mxu0 0.0
  %620 = vmatpush1.xpose.msra.mxu0 %v576
  %621 = vmatprep.subr.mxu0 0.0
  %622 = vmatpush1.xpose.msra.mxu0 %v575
  %623 = vmatprep.subr.mxu0 0.0
  %624 = vmatpush1.xpose.msra.mxu0 %v574
  %625 = vmatprep.subr.mxu0 0.0
  %626 = vmatpush2.xpose.msra.mxu0 0.0
  %627 = vmatprep.subr.mxu0 0.0
  %628 = vmatpush2.xpose.msra.mxu0 0.0
  %629 = vmatprep.subr.mxu0 0.0
  %630 = vmatpush2.xpose.msra.mxu0 0.0
  %631 = vmatprep.subr.mxu0 0.0
  %632 = vmatpush2.xpose.msra.mxu0 0.0
  %633 = vmatprep.subr.mxu0 0.0
  %634 = vmatpush2.xpose.msra.mxu0 0.0
  %635 = vmatprep.subr.mxu0 0.0
  %636 = vmatpush2.xpose.msra.mxu0 0.0
  %637 = vmatprep.subr.mxu0 0.0
  %638 = vmatpush2.xpose.msra.mxu0 0.0
  %639 = vmatprep.subr.mxu0 0.0
  %640 = vmatpush2.xpose.msra.mxu0 0.0
  %641 = vmatprep.subr.mxu0 0.0
  %642 = vmatpush2.xpose.msra.mxu0 0.0
  %643 = vmatprep.subr.mxu0 0.0
  %644 = vmatpush2.xpose.msra.mxu0 0.0
  %645 = vmatprep.subr.mxu0 0.0
  %646 = vmatpush2.xpose.msra.mxu0 0.0
  %647 = vmatprep.subr.mxu0 0.0
  %648 = vmatpush2.xpose.msra.mxu0 0.0
  %649 = vmatprep.subr.mxu0 0.0
  %650 = vmatpush2.xpose.msra.mxu0 0.0
  %651 = vmatprep.subr.mxu0 0.0
  %652 = vmatpush2.xpose.msra.mxu0 0.0
  %653 = vmatprep.subr.mxu0 0.0
  %654 = vmatpush2.xpose.msra.mxu0 0.0
  %655 = vmatprep.subr.mxu0 0.0
  %656 = vmatpush2.xpose.msra.mxu0 0.0
  %657 = vmatprep.mubr.f32.mxu0 0.0
  %658 = vmatmul.mubr.f32.gmra.mxu0 %v590
  %v659 = vpop.f32.mrf.mxu0
  %v660 = vadd.f32 %v592, %v659
  %v661 = vpop.f32.mrf.mxu0
  %662 = vdwg.mxu0
  %663 = vst [vmem:[%s9] sm:$0x1] %v660
  // Predicated region
  $region38: #{value_net_forward.1} parent=0 // pred_check
    _
  $region39: #{value_net_forward.1} parent=0 // pred_check_branch
    %665 = sbr.rel (0) target = $region41
  $region40: #{value_net_forward.1} parent=0 // pred_region
    _
  $region41: #{value_net_forward.1} parent=0 // pred_fallthru
    _
  // Predicated region
  $region42: #{value_net_forward.1} parent=0 // pred_check
    _
  $region43: #{value_net_forward.1} parent=0 // pred_check_branch
    %667 = sbr.rel (0) target = $region45
  $region44: #{value_net_forward.1} parent=0 // pred_region
    _
  $region45: #{value_net_forward.1} parent=0 // pred_fallthru
    _

</llo_original>
